<compile_context>
chip_gen: v7x
topology: tpu7x:2x2x1
jax: 0.10.0
libtpu: 0.0.40
codegen_flags: <defaults>
</compile_context>

<pallas_src>
import functools

import jax
import jax.numpy as jnp
from jax.experimental import pallas as pl
from jax.experimental.pallas import tpu as pltpu


def _policy_net_kernel(x_ref, w1_ref, b1_ref, w2_ref, b2_ref, out_ref):
    # ---- layer 1: h = relu(W1 @ x + b1)  -> [H, TB], f32 accumulation -------
    h = jnp.dot(w1_ref[...], x_ref[...], preferred_element_type=jnp.float32)
    h = jnp.maximum(h + b1_ref[...], 0.0)            # bias broadcast over lanes

    # ---- layer 2: logits = W2 @ h + b2  -> [A, TB] ---------------------------
    h = h.astype(w2_ref.dtype)                       # bf16 MXU path if requested
    logits = jnp.dot(w2_ref[...], h, preferred_element_type=jnp.float32)
    logits = logits + b2_ref[...]

    a = logits.shape[0]
    if a <= 8:
        # Elementwise softmax over the tiny sublane/action axis: pure VPU + EUP,
        # no cross-lane/XLU reduction for a 2-wide axis.
        rows = [logits[i:i + 1, :] for i in range(a)]            # A x [1, TB]
        m = functools.reduce(jnp.maximum, rows)
        es = [jnp.exp(r - m) for r in rows]
        denom = functools.reduce(jnp.add, es)
        inv = pl.reciprocal(denom, approx=True)                  # EUP slot
        inv = inv * (2.0 - denom * inv)                          # Newton -> f32 exact
        out = jnp.concatenate([e * inv for e in es], axis=0)     # [A, TB]
    else:
        # Fallback for larger action spaces: sublane-axis reduction.
        m = jnp.max(logits, axis=0, keepdims=True)
        es = jnp.exp(logits - m)
        denom = jnp.sum(es, axis=0, keepdims=True)
        inv = pl.reciprocal(denom, approx=True)
        inv = inv * (2.0 - denom * inv)
        out = es * inv

    out_ref[...] = out.astype(out_ref.dtype)


def policy_net_forward(x, w1, b1, w2, b2, *, block_b=1024, compute_dtype=None):
    """PolicyNet forward pass.

    x : [B, state_dim] float32
    w1: [hidden_dim, state_dim], b1: [hidden_dim]     (PyTorch nn.Linear layout)
    w2: [action_dim, hidden_dim], b2: [action_dim]
    Returns softmax probabilities [B, action_dim], float32.

    block_b: batch-tile size (rounded to a multiple of 128 lanes).
    compute_dtype: optional (e.g. jnp.bfloat16) storage/MXU dtype for x/W1/W2;
                   accumulation and softmax math stay float32.
    """
    B, S = x.shape
    H = w1.shape[0]
    A = w2.shape[0]

    if compute_dtype is not None:
        x = x.astype(compute_dtype)
        w1 = w1.astype(compute_dtype)
        w2 = w2.astype(compute_dtype)

    # Batch lives on the lane axis: pad to a multiple of the (128-aligned) tile.
    block_b = max(128, (int(block_b) // 128) * 128)
    lanes = int(pl.cdiv(B, 128)) * 128
    tb = min(block_b, lanes)
    padded_b = int(pl.cdiv(lanes, tb)) * tb
    grid = (padded_b // tb,)

    x_t = jnp.zeros((S, padded_b), x.dtype).at[:, :B].set(x.T)   # [S, padded_B]
    b1c = b1.reshape(H, 1).astype(jnp.float32)
    b2c = b2.reshape(A, 1).astype(jnp.float32)

    x_bytes = jnp.dtype(x.dtype).itemsize
    w_bytes = jnp.dtype(w1.dtype).itemsize
    cost = pl.CostEstimate(
        flops=2 * padded_b * (S * H + H * A),
        transcendentals=padded_b * A,
        bytes_accessed=(S * padded_b * x_bytes + A * padded_b * 4
                        + (H * S + A * H) * w_bytes + (H + A) * 4),
    )

    out_t = pl.pallas_call(
        _policy_net_kernel,
        out_shape=jax.ShapeDtypeStruct((A, padded_b), jnp.float32),
        grid=grid,
        in_specs=[
            pl.BlockSpec((S, tb), lambda i: (0, i)),     # x tile: streamed per step
            pl.BlockSpec((H, S), lambda i: (0, 0)),      # W1: VMEM-resident
            pl.BlockSpec((H, 1), lambda i: (0, 0)),      # b1: VMEM-resident
            pl.BlockSpec((A, H), lambda i: (0, 0)),      # W2: VMEM-resident
            pl.BlockSpec((A, 1), lambda i: (0, 0)),      # b2: VMEM-resident
        ],
        out_specs=pl.BlockSpec((A, tb), lambda i: (0, i)),   # lane-dense output
        compiler_params=pltpu.CompilerParams(
            dimension_semantics=("parallel",)),              # megacore on v7x
        cost_estimate=cost,
    )(x_t, w1, b1c, w2, b2c)

    return out_t[:, :B].T                                   # back to [B, A]


if __name__ == "__main__":
    # CartPole-v1 style PolicyNet.
    state_dim, hidden_dim, action_dim = 4, 128, 2
    batch = 200   # small, deliberately not a multiple of 128 (exercises padding)

    key = jax.random.PRNGKey(0)
    kx, k1, k2, k3, k4 = jax.random.split(key, 5)
    x = jax.random.normal(kx, (batch, state_dim), jnp.float32)
    # PyTorch module: weights overridden with N(0, 0.1); biases keep nn.Linear's
    # default U(-1/sqrt(fan_in), +1/sqrt(fan_in)).
    w1 = 0.1 * jax.random.normal(k1, (hidden_dim, state_dim), jnp.float32)
    w2 = 0.1 * jax.random.normal(k2, (action_dim, hidden_dim), jnp.float32)
    b1 = jax.random.uniform(k3, (hidden_dim,), jnp.float32,
                            -1.0 / state_dim ** 0.5, 1.0 / state_dim ** 0.5)
    b2 = jax.random.uniform(k4, (action_dim,), jnp.float32,
                            -1.0 / hidden_dim ** 0.5, 1.0 / hidden_dim ** 0.5)

    # f32 path (module-exact semantics); block_b=128 -> 2 batch tiles in the grid.
    fwd = jax.jit(functools.partial(policy_net_forward, block_b=128))
    probs = jax.block_until_ready(fwd(x, w1, b1, w2, b2))

    # Plain-JAX reference of the PyTorch forward.
    ref = jax.nn.softmax(jnp.maximum(x @ w1.T + b1, 0.0) @ w2.T + b2, axis=1)

    assert probs.shape == (batch, action_dim)
    assert jnp.allclose(jnp.sum(probs, axis=1), 1.0, atol=1e-5)
    assert jnp.allclose(probs, ref, atol=1e-5)

    # bf16 streaming path (v6e/v7x HBM-bandwidth optimization): softmax math is
    # still f32, so rows sum to 1 tightly; values differ from the f32 reference
    # only by bf16 input/weight rounding.
    probs_bf16 = jax.block_until_ready(
        policy_net_forward(x, w1, b1, w2, b2, block_b=128,
                           compute_dtype=jnp.bfloat16))
    assert probs_bf16.shape == (batch, action_dim)
    assert jnp.allclose(jnp.sum(probs_bf16, axis=1), 1.0, atol=1e-4)
    assert jnp.allclose(probs_bf16, ref, atol=2e-2)

    print("KERNEL_OK")
</pallas_src>

<mosaic_0001>
module attributes {stable_mosaic.version = 11 : i64} {
  func.func @_policy_net_kernel(%arg0: i32, %arg1: memref<4x128xf32, #tpu.memory_space<vmem>>, %arg2: memref<128x4xf32, #tpu.memory_space<vmem>>, %arg3: memref<128x1xf32, #tpu.memory_space<vmem>>, %arg4: memref<2x128xf32, #tpu.memory_space<vmem>>, %arg5: memref<2x1xf32, #tpu.memory_space<vmem>>, %arg6: memref<2x128xf32, #tpu.memory_space<vmem>>) attributes {dimension_semantics = [#tpu.dimension_semantics<parallel>], iteration_bounds = array<i64: 2>, scalar_prefetch = 0 : i64, scratch_operands = 0 : i64, tpu.core_type = #tpu.core_type<tc>, window_params = [{transform_indices = @transform_0, window_bounds = array<i64: 4, 128>}, {pipeline_mode = #tpu.pipeline_mode<synchronous>, transform_indices = @transform_1, window_bounds = array<i64: 128, 4>}, {pipeline_mode = #tpu.pipeline_mode<synchronous>, transform_indices = @transform_2, window_bounds = array<i64: 128, 1>}, {pipeline_mode = #tpu.pipeline_mode<synchronous>, transform_indices = @transform_3, window_bounds = array<i64: 2, 128>}, {pipeline_mode = #tpu.pipeline_mode<synchronous>, transform_indices = @transform_4, window_bounds = array<i64: 2, 1>}, {transform_indices = @transform_5, window_bounds = array<i64: 2, 128>}]} {
    %c0 = arith.constant 0 : index
    %c0_0 = arith.constant 0 : index
    %0 = vector.load %arg2[%c0, %c0_0] : memref<128x4xf32, #tpu.memory_space<vmem>>, vector<128x4xf32>
    %c0_1 = arith.constant 0 : index
    %c0_2 = arith.constant 0 : index
    %1 = vector.load %arg1[%c0_1, %c0_2] : memref<4x128xf32, #tpu.memory_space<vmem>>, vector<4x128xf32>
    %cst = arith.constant dense<0.000000e+00> : vector<128x128xf32>
    %2 = tpu.matmul %0, %1, %cst {dimension_numbers = #tpu.dot_dimension_numbers<[1], [0], [0], [1], [0, 0, 1, 1], [], []>} : vector<128x4xf32>, vector<4x128xf32>, vector<128x128xf32> -> vector<128x128xf32>
    %c0_3 = arith.constant 0 : index
    %c0_4 = arith.constant 0 : index
    %3 = vector.load %arg3[%c0_3, %c0_4] : memref<128x1xf32, #tpu.memory_space<vmem>>, vector<128x1xf32>
    %4 = vector.broadcast %3 : vector<128x1xf32> to vector<128x128xf32>
    %5 = arith.addf %2, %4 : vector<128x128xf32>
    %cst_5 = arith.constant 0.000000e+00 : f32
    %6 = vector.broadcast %cst_5 : f32 to vector<128x128xf32>
    %7 = arith.maximumf %5, %6 : vector<128x128xf32>
    %c0_6 = arith.constant 0 : index
    %c0_7 = arith.constant 0 : index
    %8 = vector.load %arg4[%c0_6, %c0_7] : memref<2x128xf32, #tpu.memory_space<vmem>>, vector<2x128xf32>
    %cst_8 = arith.constant dense<0.000000e+00> : vector<2x128xf32>
    %9 = tpu.matmul %8, %7, %cst_8 {dimension_numbers = #tpu.dot_dimension_numbers<[1], [0], [0], [1], [0, 0, 1, 1], [], []>} : vector<2x128xf32>, vector<128x128xf32>, vector<2x128xf32> -> vector<2x128xf32>
    %c0_9 = arith.constant 0 : index
    %c0_10 = arith.constant 0 : index
    %10 = vector.load %arg5[%c0_9, %c0_10] : memref<2x1xf32, #tpu.memory_space<vmem>>, vector<2x1xf32>
    %11 = vector.broadcast %10 : vector<2x1xf32> to vector<2x128xf32>
    %12 = arith.addf %9, %11 : vector<2x128xf32>
    %13 = vector.extract_strided_slice %12 {offsets = [0, 0], sizes = [1, 128], strides = [1, 1]} : vector<2x128xf32> to vector<1x128xf32>
    %14 = vector.extract_strided_slice %12 {offsets = [1, 0], sizes = [1, 128], strides = [1, 1]} : vector<2x128xf32> to vector<1x128xf32>
    %15 = arith.maximumf %13, %14 : vector<1x128xf32>
    %16 = arith.subf %13, %15 : vector<1x128xf32>
    %17 = math.exp %16 : vector<1x128xf32>
    %18 = arith.subf %14, %15 : vector<1x128xf32>
    %19 = math.exp %18 : vector<1x128xf32>
    %20 = arith.addf %17, %19 : vector<1x128xf32>
    %21 = tpu.reciprocal %20 {approx = true} : vector<1x128xf32> -> vector<1x128xf32>
    %22 = arith.mulf %20, %21 : vector<1x128xf32>
    %cst_11 = arith.constant 2.000000e+00 : f32
    %23 = vector.broadcast %cst_11 : f32 to vector<1x128xf32>
    %24 = arith.subf %23, %22 : vector<1x128xf32>
    %25 = arith.mulf %21, %24 : vector<1x128xf32>
    %26 = arith.mulf %17, %25 : vector<1x128xf32>
    %27 = arith.mulf %19, %25 : vector<1x128xf32>
    %28 = tpu.concatenate %26, %27 in 0 : vector<1x128xf32>, vector<1x128xf32> -> vector<2x128xf32>
    %c0_12 = arith.constant 0 : index
    %c0_13 = arith.constant 0 : index
    %29 = vector.load %arg6[%c0_12, %c0_13] : memref<2x128xf32, #tpu.memory_space<vmem>>, vector<2x128xf32>
    tpu.vector_store %arg6[%c0_12, %c0_13], %28 {strides = array<i32>} : memref<2x128xf32, #tpu.memory_space<vmem>>, vector<2x128xf32>,
    return
  }
  func.func @transform_0(%arg0: i32) -> (i32, i32) {
    %c0_i32 = arith.constant 0 : i32
    %c0_i32_0 = arith.constant 0 : i32
    return %c0_i32, %arg0 : i32, i32
  }
  func.func @transform_1(%arg0: i32) -> (i32, i32) {
    %c0_i32 = arith.constant 0 : i32
    %c0_i32_0 = arith.constant 0 : i32
    %c0_i32_1 = arith.constant 0 : i32
    return %c0_i32, %c0_i32_0 : i32, i32
  }
  func.func @transform_2(%arg0: i32) -> (i32, i32) {
    %c0_i32 = arith.constant 0 : i32
    %c0_i32_0 = arith.constant 0 : i32
    %c0_i32_1 = arith.constant 0 : i32
    return %c0_i32, %c0_i32_0 : i32, i32
  }
  func.func @transform_3(%arg0: i32) -> (i32, i32) {
    %c0_i32 = arith.constant 0 : i32
    %c0_i32_0 = arith.constant 0 : i32
    %c0_i32_1 = arith.constant 0 : i32
    return %c0_i32, %c0_i32_0 : i32, i32
  }
  func.func @transform_4(%arg0: i32) -> (i32, i32) {
    %c0_i32 = arith.constant 0 : i32
    %c0_i32_0 = arith.constant 0 : i32
    %c0_i32_1 = arith.constant 0 : i32
    return %c0_i32, %c0_i32_0 : i32, i32
  }
  func.func @transform_5(%arg0: i32) -> (i32, i32) {
    %c0_i32 = arith.constant 0 : i32
    %c0_i32_0 = arith.constant 0 : i32
    return %c0_i32, %arg0 : i32, i32
  }
}

</mosaic_0001>

<llo_original>
// kernel: policy_net_forward.1
$region0: #{policy_net_forward.1}
  #allocation0 [shape = 'u32[]', space=smem, size = 0x4, offset = 0x4, fixed_abs, tag = 'smem constant byte address 0x4 - core index']
  #allocation1 [shape = 'u32[144,128]{1,0:T(1,128)}', space=vmem, size = 0x12000, scoped, tag = 'internal scratch']
  %s0 = inlined_call_operand.vmem [shape: f32[4,256], index: 0, kind: input, shape index: {}]
  %s1 = inlined_call_operand.vmem [shape: f32[128,4], index: 1, kind: input, shape index: {}]
  %s2 = inlined_call_operand.vmem [shape: f32[128,1], index: 2, kind: input, shape index: {}]
  %s3 = inlined_call_operand.vmem [shape: f32[2,128], index: 3, kind: input, shape index: {}]
  %s4 = inlined_call_operand.vmem [shape: f32[2,1], index: 4, kind: input, shape index: {}]
  %s5 = inlined_call_operand.vmem [shape: f32[2,256], index: 5, kind: output, shape index: {}]
  %s6 = sld [smem:[#allocation0]]
  $region53: #{policy_net_forward.1} parent=0
    _
  %s8 = ssub.s32 1, %s6
  %s9 = scalar_select 0, %s8, %s6
  loop: start=0, step=1, limit=4
  $region2: #{policy_net_forward.1} parent=0 // loop_pre_header
    _
  $region3: #{policy_net_forward.1} parent=0 // loop_header
    %s11 = sphi 0, %s15
    %p12 = scmp.ge.s32.totalorder %s11, 4
    %s21 = sphi 0, %s23
    %s24 = sphi 0, %s21
    %s25 = sphi 0, %s24
    %s41 = sphi 0, %s25
    %s45 = sphi 0, %s45
    %s47 = sphi 0, %s45
    %s48 = sphi 0, %s47
    %s62 = sphi 0, %s48
    %s66 = sphi 0, %s66
    %s68 = sphi 0, %s66
    %s69 = sphi 0, %s68
    %s83 = sphi 0, %s69
    %s87 = sphi 0, %s87
    %s89 = sphi 0, %s87
    %s90 = sphi 0, %s89
    %s104 = sphi 0, %s90
    %s108 = sphi 0, %s108
    %s110 = sphi 0, %s108
    %s111 = sphi 0, %s110
    %s125 = sphi 0, %s111
    %s131 = sphi 0, %s133
    %s134 = sphi 0, %s131
    %s135 = sphi 0, %s134
    %s151 = sphi 0, %s135
  $region4: #{policy_net_forward.1} parent=0 // loop_header_branch
    %14 = sbr.rel (%p12) target = $region8
  $region5: #{policy_net_forward.1} parent=0 // loop_body
    %s16 = ssub.s32 %s11, 1
    %s17 = ssub.s32 %s11, 2
    %s18 = sadd.s32 %s11, 1
    %s19 = ssub.s32 %s11, %s18
    %p20 = scmp.eq.s32.totalorder %s19, 0
    %s22 = sadd.s32 %s21, 1
    %s23 = scalar_select %p20, %s21, %s22
    %p26 = pneg %p20
    %p27 = scmp.eq.s32.totalorder %s11, 1
    %p28 = por %p26, %p27
    %p29 = scmp.ne.s32.totalorder %s21, %s24
    %p30 = scmp.eq.s32.totalorder %s11, 0
    %p31 = por %p29, %p30
    %p32 = scmp.ne.s32.totalorder %s21, %s24
    %p33 = scmp.eq.s32.totalorder %s16, 1
    %p34 = por %p32, %p33
    %p35 = scmp.ne.s32.totalorder %s24, %s25
    %p36 = scmp.eq.s32.totalorder %s16, 0
    %p37 = por %p35, %p36
    %p38 = scmp.ne.s32.totalorder %s24, %s25
    %p39 = scmp.eq.s32.totalorder %s17, 1
    %p40 = por %p38, %p39
    %p42 = scmp.ne.s32.totalorder %s25, %s41
    %p43 = scmp.eq.s32.totalorder %s17, 0
    %p44 = por %p42, %p43
    %s46 = sadd.s32 %s45, 1
    %p49 = scmp.eq.s32.totalorder %s11, 1
    %p50 = scmp.ne.s32.totalorder %s45, %s47
    %p51 = scmp.eq.s32.totalorder %s11, 0
    %p52 = por %p50, %p51
    %p53 = scmp.ne.s32.totalorder %s45, %s47
    %p54 = scmp.eq.s32.totalorder %s16, 1
    %p55 = por %p53, %p54
    %p56 = scmp.ne.s32.totalorder %s47, %s48
    %p57 = scmp.eq.s32.totalorder %s16, 0
    %p58 = por %p56, %p57
    %p59 = scmp.ne.s32.totalorder %s47, %s48
    %p60 = scmp.eq.s32.totalorder %s17, 1
    %p61 = por %p59, %p60
    %p63 = scmp.ne.s32.totalorder %s48, %s62
    %p64 = scmp.eq.s32.totalorder %s17, 0
    %p65 = por %p63, %p64
    %s67 = sadd.s32 %s66, 1
    %p70 = scmp.eq.s32.totalorder %s11, 1
    %p71 = scmp.ne.s32.totalorder %s66, %s68
    %p72 = scmp.eq.s32.totalorder %s11, 0
    %p73 = por %p71, %p72
    %p74 = scmp.ne.s32.totalorder %s66, %s68
    %p75 = scmp.eq.s32.totalorder %s16, 1
    %p76 = por %p74, %p75
    %p77 = scmp.ne.s32.totalorder %s68, %s69
    %p78 = scmp.eq.s32.totalorder %s16, 0
    %p79 = por %p77, %p78
    %p80 = scmp.ne.s32.totalorder %s68, %s69
    %p81 = scmp.eq.s32.totalorder %s17, 1
    %p82 = por %p80, %p81
    %p84 = scmp.ne.s32.totalorder %s69, %s83
    %p85 = scmp.eq.s32.totalorder %s17, 0
    %p86 = por %p84, %p85
    %s88 = sadd.s32 %s87, 1
    %p91 = scmp.eq.s32.totalorder %s11, 1
    %p92 = scmp.ne.s32.totalorder %s87, %s89
    %p93 = scmp.eq.s32.totalorder %s11, 0
    %p94 = por %p92, %p93
    %p95 = scmp.ne.s32.totalorder %s87, %s89
    %p96 = scmp.eq.s32.totalorder %s16, 1
    %p97 = por %p95, %p96
    %p98 = scmp.ne.s32.totalorder %s89, %s90
    %p99 = scmp.eq.s32.totalorder %s16, 0
    %p100 = por %p98, %p99
    %p101 = scmp.ne.s32.totalorder %s89, %s90
    %p102 = scmp.eq.s32.totalorder %s17, 1
    %p103 = por %p101, %p102
    %p105 = scmp.ne.s32.totalorder %s90, %s104
    %p106 = scmp.eq.s32.totalorder %s17, 0
    %p107 = por %p105, %p106
    %s109 = sadd.s32 %s108, 1
    %p112 = scmp.eq.s32.totalorder %s11, 1
    %p113 = scmp.ne.s32.totalorder %s108, %s110
    %p114 = scmp.eq.s32.totalorder %s11, 0
    %p115 = por %p113, %p114
    %p116 = scmp.ne.s32.totalorder %s108, %s110
    %p117 = scmp.eq.s32.totalorder %s16, 1
    %p118 = por %p116, %p117
    %p119 = scmp.ne.s32.totalorder %s110, %s111
    %p120 = scmp.eq.s32.totalorder %s16, 0
    %p121 = por %p119, %p120
    %p122 = scmp.ne.s32.totalorder %s110, %s111
    %p123 = scmp.eq.s32.totalorder %s17, 1
    %p124 = por %p122, %p123
    %p126 = scmp.ne.s32.totalorder %s111, %s125
    %p127 = scmp.eq.s32.totalorder %s17, 0
    %p128 = por %p126, %p127
    %s129 = ssub.s32 %s11, %s18
    %p130 = scmp.eq.s32.totalorder %s129, 0
    %s132 = sadd.s32 %s131, 1
    %s133 = scalar_select %p130, %s131, %s132
    %p136 = pneg %p130
    %p137 = scmp.eq.s32.totalorder %s11, 1
    %p138 = por %p136, %p137
    %p139 = scmp.ne.s32.totalorder %s131, %s134
    %p140 = scmp.eq.s32.totalorder %s11, 0
    %p141 = por %p139, %p140
    %p142 = scmp.ne.s32.totalorder %s131, %s134
    %p143 = scmp.eq.s32.totalorder %s16, 1
    %p144 = por %p142, %p143
    %p145 = scmp.ne.s32.totalorder %s134, %s135
    %p146 = scmp.eq.s32.totalorder %s16, 0
    %p147 = por %p145, %p146
    %p148 = scmp.ne.s32.totalorder %s134, %s135
    %p149 = scmp.eq.s32.totalorder %s17, 1
    %p150 = por %p148, %p149
    %p152 = scmp.ne.s32.totalorder %s135, %s151
    %p153 = scmp.eq.s32.totalorder %s17, 0
    %p154 = por %p152, %p153
    %p155 = scmp.le.s32.totalorder 1, %s11
    %p156 = scmp.lt.s32.totalorder %s11, 3
    %p157 = pnand %p155, %p156
    %p158 = pneg %p157
    // Predicated region
    $region9: #{policy_net_forward.1} parent=5 // pred_check
      _
    $region10: #{policy_net_forward.1} parent=5 // pred_check_branch
      %160 = sbr.rel (%p157) target = $region12
    $region11: #{policy_net_forward.1} parent=5 // pred_region
      %s161 = ssub.s32 %s11, 1
      // Predicated region
      $region13: #{policy_net_forward.1} parent=11 // pred_check
        %p162 = pneg %p58
      $region14: #{policy_net_forward.1} parent=11 // pred_check_branch
        %164 = sbr.rel (%p162) target = $region16
      $region15: #{policy_net_forward.1} parent=11 // pred_region
        _
      $region16: #{policy_net_forward.1} parent=11 // pred_fallthru
        _
      // Predicated region
      $region17: #{policy_net_forward.1} parent=11 // pred_check
        %p165 = pneg %p79
      $region18: #{policy_net_forward.1} parent=11 // pred_check_branch
        %167 = sbr.rel (%p165) target = $region20
      $region19: #{policy_net_forward.1} parent=11 // pred_region
        _
      $region20: #{policy_net_forward.1} parent=11 // pred_fallthru
        _
      // Predicated region
      $region21: #{policy_net_forward.1} parent=11 // pred_check
        %p168 = pneg %p100
      $region22: #{policy_net_forward.1} parent=11 // pred_check_branch
        %170 = sbr.rel (%p168) target = $region24
      $region23: #{policy_net_forward.1} parent=11 // pred_region
        _
      $region24: #{policy_net_forward.1} parent=11 // pred_fallthru
        _
      // Predicated region
      $region25: #{policy_net_forward.1} parent=11 // pred_check
        %p171 = pneg %p121
      $region26: #{policy_net_forward.1} parent=11 // pred_check_branch
        %173 = sbr.rel (%p171) target = $region28
      $region27: #{policy_net_forward.1} parent=11 // pred_region
        _
      $region28: #{policy_net_forward.1} parent=11 // pred_fallthru
        _
    $region12: #{policy_net_forward.1} parent=5 // pred_fallthru
      _
    %p174 = scmp.lt.s32.totalorder %s11, 2
    // Predicated region
    $region29: #{policy_net_forward.1} parent=5 // pred_check
      %p175 = pneg %p174
    $region30: #{policy_net_forward.1} parent=5 // pred_check_branch
      %177 = sbr.rel (%p175) target = $region32
    $region31: #{policy_net_forward.1} parent=5 // pred_region
      // Predicated region
      $region33: #{policy_net_forward.1} parent=31 // pred_check
        %p178 = pneg %p31
      $region34: #{policy_net_forward.1} parent=31 // pred_check_branch
        %180 = sbr.rel (%p178) target = $region36
      $region35: #{policy_net_forward.1} parent=31 // pred_region
        %p181 = scmp.lt.s32.totalorder %s11, 1
        %s182 = scalar_select %p181, %s11, 1
        %s183 = smul.addr %s182, 4
        %s184 = scalar_lea.vmem %s0, %s183
      $region36: #{policy_net_forward.1} parent=31 // pred_fallthru
        _
    $region32: #{policy_net_forward.1} parent=5 // pred_fallthru
      _
    %p185 = scmp.le.s32.totalorder 1, %s11
    %p186 = scmp.lt.s32.totalorder %s11, 3
    %p187 = pnand %p185, %p186
    %p188 = pneg %p187
    // Predicated region
    $region37: #{policy_net_forward.1} parent=5 // pred_check
      _
    $region38: #{policy_net_forward.1} parent=5 // pred_check_branch
      %190 = sbr.rel (%p187) target = $region40
    $region39: #{policy_net_forward.1} parent=5 // pred_region
      %s191 = ssub.s32 %s11, 1
      %p192 = scmp.lt.s32.totalorder %s16, 1
      %s193 = scalar_select %p192, %s16, 1
      %s194 = smul.addr %s193, 4
      %s195 = scalar_lea.vmem %s0, %s194
      %p196 = pneg %p37
      %p197 = pneg %p34
      %p198 = pneg %p58
      %p199 = pneg %p55
      %p200 = pneg %p79
      %p201 = pneg %p76
      %p202 = pneg %p100
      %p203 = pneg %p97
      %p204 = pneg %p121
      %p205 = pneg %p118
      %p206 = pneg %p147
      %p207 = pneg %p144
      %p208 = scmp.lt.s32.totalorder %s16, 1
      %s209 = scalar_select %p208, %s16, 1
      %s210 = smul.addr %s209, 2
      %s211 = scalar_lea.vmem %s5, %s210
      %p212 = scmp.lt.s32.totalorder %s16, 1
      %s213 = scalar_select %p212, %s16, 1
      %s214 = smul.addr %s213, 4
      %s215 = scalar_lea.vmem %s0, %s214
      %p216 = scmp.lt.s32.totalorder %s16, 1
      %s217 = scalar_select %p216, %s16, 1
      %s218 = smul.addr %s217, 2
      %s219 = scalar_lea.vmem %s5, %s218
      %v220 = vld [vmem:[%s1] sm:$0xff]
      %v221 = vld [vmem:[%s1 + $0x8] sm:$0xff]
      %v222 = vld [vmem:[%s1 + $0x10] sm:$0xff]
      %v223 = vld [vmem:[%s1 + $0x18] sm:$0xff]
      %v224 = vld [vmem:[%s1 + $0x20] sm:$0xff]
      %v225 = vld [vmem:[%s1 + $0x28] sm:$0xff]
      %v226 = vld [vmem:[%s1 + $0x30] sm:$0xff]
      %v227 = vld [vmem:[%s1 + $0x38] sm:$0xff]
      %v228 = vld [vmem:[%s1 + $0x40] sm:$0xff]
      %v229 = vld [vmem:[%s1 + $0x48] sm:$0xff]
      %v230 = vld [vmem:[%s1 + $0x50] sm:$0xff]
      %v231 = vld [vmem:[%s1 + $0x58] sm:$0xff]
      %v232 = vld [vmem:[%s1 + $0x60] sm:$0xff]
      %v233 = vld [vmem:[%s1 + $0x68] sm:$0xff]
      %v234 = vld [vmem:[%s1 + $0x70] sm:$0xff]
      %v235 = vld [vmem:[%s1 + $0x78] sm:$0xff]
      %v236 = vld [vmem:[%s215] sm:$0xf]
      %v237 = vld [vmem:[%s2] sm:$0xff]
      %v238 = vld [vmem:[%s2 + $0x8] sm:$0xff]
      %v239 = vld [vmem:[%s2 + $0x10] sm:$0xff]
      %v240 = vld [vmem:[%s2 + $0x18] sm:$0xff]
      %v241 = vld [vmem:[%s2 + $0x20] sm:$0xff]
      %v242 = vld [vmem:[%s2 + $0x28] sm:$0xff]
      %v243 = vld [vmem:[%s2 + $0x30] sm:$0xff]
      %v244 = vld [vmem:[%s2 + $0x38] sm:$0xff]
      %v245 = vld [vmem:[%s2 + $0x40] sm:$0xff]
      %v246 = vld [vmem:[%s2 + $0x48] sm:$0xff]
      %v247 = vld [vmem:[%s2 + $0x50] sm:$0xff]
      %v248 = vld [vmem:[%s2 + $0x58] sm:$0xff]
      %v249 = vld [vmem:[%s2 + $0x60] sm:$0xff]
      %v250 = vld [vmem:[%s2 + $0x68] sm:$0xff]
      %v251 = vld [vmem:[%s2 + $0x70] sm:$0xff]
      %v252 = vld [vmem:[%s2 + $0x78] sm:$0xff]
      %254 = vset.pattern.permute.xlu0 0
      %255 = vperm.xlu0 %254, %v237
      %v256 = vpop.permute.xlu0 %255
      %259 = vset.pattern.permute.xlu0 0
      %260 = vperm.xlu0 %259, %v238
      %v261 = vpop.permute.xlu0 %260
      %264 = vset.pattern.permute.xlu0 0
      %265 = vperm.xlu0 %264, %v239
      %v266 = vpop.permute.xlu0 %265
      %269 = vset.pattern.permute.xlu0 0
      %270 = vperm.xlu0 %269, %v240
      %v271 = vpop.permute.xlu0 %270
      %274 = vset.pattern.permute.xlu0 0
      %275 = vperm.xlu0 %274, %v241
      %v276 = vpop.permute.xlu0 %275
      %279 = vset.pattern.permute.xlu0 0
      %280 = vperm.xlu0 %279, %v242
      %v281 = vpop.permute.xlu0 %280
      %284 = vset.pattern.permute.xlu0 0
      %285 = vperm.xlu0 %284, %v243
      %v286 = vpop.permute.xlu0 %285
      %289 = vset.pattern.permute.xlu0 0
      %290 = vperm.xlu0 %289, %v244
      %v291 = vpop.permute.xlu0 %290
      %294 = vset.pattern.permute.xlu0 0
      %295 = vperm.xlu0 %294, %v245
      %v296 = vpop.permute.xlu0 %295
      %299 = vset.pattern.permute.xlu0 0
      %300 = vperm.xlu0 %299, %v246
      %v301 = vpop.permute.xlu0 %300
      %304 = vset.pattern.permute.xlu0 0
      %305 = vperm.xlu0 %304, %v247
      %v306 = vpop.permute.xlu0 %305
      %309 = vset.pattern.permute.xlu0 0
      %310 = vperm.xlu0 %309, %v248
      %v311 = vpop.permute.xlu0 %310
      %314 = vset.pattern.permute.xlu0 0
      %315 = vperm.xlu0 %314, %v249
      %v316 = vpop.permute.xlu0 %315
      %319 = vset.pattern.permute.xlu0 0
      %320 = vperm.xlu0 %319, %v250
      %v321 = vpop.permute.xlu0 %320
      %324 = vset.pattern.permute.xlu0 0
      %325 = vperm.xlu0 %324, %v251
      %v326 = vpop.permute.xlu0 %325
      %329 = vset.pattern.permute.xlu0 0
      %330 = vperm.xlu0 %329, %v252
      %v331 = vpop.permute.xlu0 %330
      %vm333 = vcmask 31744
      %v335 = vsel %vm333, %v220, 0
      %v338 = vsel %vm333, %v221, 0
      %v341 = vsel %vm333, %v222, 0
      %v344 = vsel %vm333, %v223, 0
      %v347 = vsel %vm333, %v224, 0
      %v350 = vsel %vm333, %v225, 0
      %v353 = vsel %vm333, %v226, 0
      %v356 = vsel %vm333, %v227, 0
      %v359 = vsel %vm333, %v228, 0
      %v362 = vsel %vm333, %v229, 0
      %v365 = vsel %vm333, %v230, 0
      %v368 = vsel %vm333, %v231, 0
      %v371 = vsel %vm333, %v232, 0
      %v374 = vsel %vm333, %v233, 0
      %v377 = vsel %vm333, %v234, 0
      %v380 = vsel %vm333, %v235, 0
      %vm382 = vcmask 1043456
      %v384 = vsel %vm382, %v236, 0
      %386 = vmatprep.subr.mxu0 0.0
      %387 = vmatpush1.msra.mxu0 %v384
      %388 = vmatprep.subr.mxu0 0.0
      %389 = vmatpush1.msra.mxu0 0.0
      %390 = vmatprep.subr.mxu0 0.0
      %391 = vmatpush1.msra.mxu0 0.0
      %392 = vmatprep.subr.mxu0 0.0
      %393 = vmatpush1.msra.mxu0 0.0
      %394 = vmatprep.subr.mxu0 0.0
      %395 = vmatpush1.msra.mxu0 0.0
      %396 = vmatprep.subr.mxu0 0.0
      %397 = vmatpush1.msra.mxu0 0.0
      %398 = vmatprep.subr.mxu0 0.0
      %399 = vmatpush1.msra.mxu0 0.0
      %400 = vmatprep.subr.mxu0 0.0
      %401 = vmatpush1.msra.mxu0 0.0
      %402 = vmatprep.subr.mxu0 0.0
      %403 = vmatpush1.msra.mxu0 0.0
      %404 = vmatprep.subr.mxu0 0.0
      %405 = vmatpush1.msra.mxu0 0.0
      %406 = vmatprep.subr.mxu0 0.0
      %407 = vmatpush1.msra.mxu0 0.0
      %408 = vmatprep.subr.mxu0 0.0
      %409 = vmatpush1.msra.mxu0 0.0
      %410 = vmatprep.subr.mxu0 0.0
      %411 = vmatpush1.msra.mxu0 0.0
      %412 = vmatprep.subr.mxu0 0.0
      %413 = vmatpush1.msra.mxu0 0.0
      %414 = vmatprep.subr.mxu0 0.0
      %415 = vmatpush1.msra.mxu0 0.0
      %416 = vmatprep.subr.mxu0 0.0
      %417 = vmatpush1.msra.mxu0 0.0
      %418 = vmatprep.subr.mxu0 0.0
      %419 = vmatpush1.msra.mxu0 0.0
      %420 = vmatprep.subr.mxu0 0.0
      %421 = vmatpush1.msra.mxu0 0.0
      %422 = vmatprep.subr.mxu0 0.0
      %423 = vmatpush1.msra.mxu0 0.0
      %424 = vmatprep.subr.mxu0 0.0
      %425 = vmatpush1.msra.mxu0 0.0
      %426 = vmatprep.subr.mxu0 0.0
      %427 = vmatpush1.msra.mxu0 0.0
      %428 = vmatprep.subr.mxu0 0.0
      %429 = vmatpush1.msra.mxu0 0.0
      %430 = vmatprep.subr.mxu0 0.0
      %431 = vmatpush1.msra.mxu0 0.0
      %432 = vmatprep.subr.mxu0 0.0
      %433 = vmatpush1.msra.mxu0 0.0
      %434 = vmatprep.subr.mxu0 0.0
      %435 = vmatpush1.msra.mxu0 0.0
      %436 = vmatprep.subr.mxu0 0.0
      %437 = vmatpush1.msra.mxu0 0.0
      %438 = vmatprep.subr.mxu0 0.0
      %439 = vmatpush1.msra.mxu0 0.0
      %440 = vmatprep.subr.mxu0 0.0
      %441 = vmatpush1.msra.mxu0 0.0
      %442 = vmatprep.subr.mxu0 0.0
      %443 = vmatpush1.msra.mxu0 0.0
      %444 = vmatprep.subr.mxu0 0.0
      %445 = vmatpush1.msra.mxu0 0.0
      %446 = vmatprep.subr.mxu0 0.0
      %447 = vmatpush1.msra.mxu0 0.0
      %448 = vmatprep.subr.mxu0 0.0
      %449 = vmatpush1.msra.mxu0 0.0
      %450 = vmatprep.mubr.f32.mxu0 0.0
      %451 = vmatmul.mubr.f32.gmra.mrb[0].mxu0 %v335
      %v452 = vpop.f32.mrb[0].mxu0
      %v453 = vadd.f32 %v256, %v452
      %v454 = vpop.f32.mrb[0].mxu0
      %455 = vmatprep.mubr.f32.mxu0 0.0
      %456 = vmatmul.mubr.f32.gmra.mrb[0].mxu0 %v338
      %v457 = vpop.f32.mrb[0].mxu0
      %v458 = vadd.f32 %v261, %v457
      %v459 = vpop.f32.mrb[0].mxu0
      %460 = vmatprep.mubr.f32.mxu0 0.0
      %461 = vmatmul.mubr.f32.gmra.mrb[0].mxu0 %v341
      %v462 = vpop.f32.mrb[0].mxu0
      %v463 = vadd.f32 %v266, %v462
      %v464 = vpop.f32.mrb[0].mxu0
      %465 = vmatprep.mubr.f32.mxu0 0.0
      %466 = vmatmul.mubr.f32.gmra.mrb[0].mxu0 %v344
      %v467 = vpop.f32.mrb[0].mxu0
      %v468 = vadd.f32 %v271, %v467
      %v469 = vpop.f32.mrb[0].mxu0
      %470 = vmatprep.mubr.f32.mxu0 0.0
      %471 = vmatmul.mubr.f32.gmra.mrb[0].mxu0 %v347
      %v472 = vpop.f32.mrb[0].mxu0
      %v473 = vadd.f32 %v276, %v472
      %v474 = vpop.f32.mrb[0].mxu0
      %475 = vmatprep.mubr.f32.mxu0 0.0
      %476 = vmatmul.mubr.f32.gmra.mrb[0].mxu0 %v350
      %v477 = vpop.f32.mrb[0].mxu0
      %v478 = vadd.f32 %v281, %v477
      %v479 = vpop.f32.mrb[0].mxu0
      %480 = vmatprep.mubr.f32.mxu0 0.0
      %481 = vmatmul.mubr.f32.gmra.mrb[0].mxu0 %v353
      %v482 = vpop.f32.mrb[0].mxu0
      %v483 = vadd.f32 %v286, %v482
      %v484 = vpop.f32.mrb[0].mxu0
      %485 = vmatprep.mubr.f32.mxu0 0.0
      %486 = vmatmul.mubr.f32.gmra.mrb[0].mxu0 %v356
      %v487 = vpop.f32.mrb[0].mxu0
      %v488 = vadd.f32 %v291, %v487
      %v489 = vpop.f32.mrb[0].mxu0
      %490 = vmatprep.mubr.f32.mxu0 0.0
      %491 = vmatmul.mubr.f32.gmra.mrb[0].mxu0 %v359
      %v492 = vpop.f32.mrb[0].mxu0
      %v493 = vadd.f32 %v296, %v492
      %v494 = vpop.f32.mrb[0].mxu0
      %495 = vmatprep.mubr.f32.mxu0 0.0
      %496 = vmatmul.mubr.f32.gmra.mrb[0].mxu0 %v362
      %v497 = vpop.f32.mrb[0].mxu0
      %v498 = vadd.f32 %v301, %v497
      %v499 = vpop.f32.mrb[0].mxu0
      %500 = vmatprep.mubr.f32.mxu0 0.0
      %501 = vmatmul.mubr.f32.gmra.mrb[0].mxu0 %v365
      %v502 = vpop.f32.mrb[0].mxu0
      %v503 = vadd.f32 %v306, %v502
      %v504 = vpop.f32.mrb[0].mxu0
      %505 = vmatprep.mubr.f32.mxu0 0.0
      %506 = vmatmul.mubr.f32.gmra.mrb[0].mxu0 %v368
      %v507 = vpop.f32.mrb[0].mxu0
      %v508 = vadd.f32 %v311, %v507
      %v509 = vpop.f32.mrb[0].mxu0
      %510 = vmatprep.mubr.f32.mxu0 0.0
      %511 = vmatmul.mubr.f32.gmra.mrb[0].mxu0 %v371
      %v512 = vpop.f32.mrb[0].mxu0
      %v513 = vadd.f32 %v316, %v512
      %v514 = vpop.f32.mrb[0].mxu0
      %515 = vmatprep.mubr.f32.mxu0 0.0
      %516 = vmatmul.mubr.f32.gmra.mrb[0].mxu0 %v374
      %v517 = vpop.f32.mrb[0].mxu0
      %v518 = vadd.f32 %v321, %v517
      %v519 = vpop.f32.mrb[0].mxu0
      %520 = vmatprep.mubr.f32.mxu0 0.0
      %521 = vmatmul.mubr.f32.gmra.mrb[0].mxu0 %v377
      %v522 = vpop.f32.mrb[0].mxu0
      %v523 = vadd.f32 %v326, %v522
      %v524 = vpop.f32.mrb[0].mxu0
      %525 = vmatprep.mubr.f32.mxu0 0.0
      %526 = vmatmul.mubr.f32.gmra.mrb[0].mxu0 %v380
      %v527 = vpop.f32.mrb[0].mxu0
      %v528 = vadd.f32 %v331, %v527
      %v529 = vpop.f32.mrb[0].mxu0
      %530 = vdwg.mxu0
      %v531 = vmax.f32 %v453, 0.0
      %v532 = vmax.f32 %v458, 0.0
      %v533 = vmax.f32 %v463, 0.0
      %v534 = vmax.f32 %v468, 0.0
      %v535 = vmax.f32 %v473, 0.0
      %v536 = vmax.f32 %v478, 0.0
      %v537 = vmax.f32 %v483, 0.0
      %v538 = vmax.f32 %v488, 0.0
      %v539 = vmax.f32 %v493, 0.0
      %v540 = vmax.f32 %v498, 0.0
      %v541 = vmax.f32 %v503, 0.0
      %v542 = vmax.f32 %v508, 0.0
      %v543 = vmax.f32 %v513, 0.0
      %v544 = vmax.f32 %v518, 0.0
      %v545 = vmax.f32 %v523, 0.0
      %v546 = vmax.f32 %v528, 0.0
      %v547 = vld [vmem:[%s3] sm:$0x3]
      %v548 = vld [vmem:[%s4] sm:$0x3]
      %550 = vset.pattern.permute.xlu0 0
      %551 = vperm.xlu0 %550, %v548
      %v552 = vpop.permute.xlu0 %551
      %554 = vmatprep.subr.mxu0 0.0
      %555 = vmatpush1.msra.mxu0 %v531
      %556 = vmatprep.subr.mxu0 0.0
      %557 = vmatpush1.msra.mxu0 %v532
      %558 = vmatprep.subr.mxu0 0.0
      %559 = vmatpush1.msra.mxu0 %v533
      %560 = vmatprep.subr.mxu0 0.0
      %561 = vmatpush1.msra.mxu0 %v534
      %562 = vmatprep.subr.mxu0 0.0
      %563 = vmatpush1.msra.mxu0 %v535
      %564 = vmatprep.subr.mxu0 0.0
      %565 = vmatpush1.msra.mxu0 %v536
      %566 = vmatprep.subr.mxu0 0.0
      %567 = vmatpush1.msra.mxu0 %v537
      %568 = vmatprep.subr.mxu0 0.0
      %569 = vmatpush1.msra.mxu0 %v538
      %570 = vmatprep.subr.mxu0 0.0
      %571 = vmatpush1.msra.mxu0 %v539
      %572 = vmatprep.subr.mxu0 0.0
      %573 = vmatpush1.msra.mxu0 %v540
      %574 = vmatprep.subr.mxu0 0.0
      %575 = vmatpush1.msra.mxu0 %v541
      %576 = vmatprep.subr.mxu0 0.0
      %577 = vmatpush1.msra.mxu0 %v542
      %578 = vmatprep.subr.mxu0 0.0
      %579 = vmatpush1.msra.mxu0 %v543
      %580 = vmatprep.subr.mxu0 0.0
      %581 = vmatpush1.msra.mxu0 %v544
      %582 = vmatprep.subr.mxu0 0.0
      %583 = vmatpush1.msra.mxu0 %v545
      %584 = vmatprep.subr.mxu0 0.0
      %585 = vmatpush1.msra.mxu0 %v546
      %586 = vmatprep.subr.mxu0 0.0
      %587 = vmatpush1.msra.mxu0 0.0
      %588 = vmatprep.subr.mxu0 0.0
      %589 = vmatpush1.msra.mxu0 0.0
      %590 = vmatprep.subr.mxu0 0.0
      %591 = vmatpush1.msra.mxu0 0.0
      %592 = vmatprep.subr.mxu0 0.0
      %593 = vmatpush1.msra.mxu0 0.0
      %594 = vmatprep.subr.mxu0 0.0
      %595 = vmatpush1.msra.mxu0 0.0
      %596 = vmatprep.subr.mxu0 0.0
      %597 = vmatpush1.msra.mxu0 0.0
      %598 = vmatprep.subr.mxu0 0.0
      %599 = vmatpush1.msra.mxu0 0.0
      %600 = vmatprep.subr.mxu0 0.0
      %601 = vmatpush1.msra.mxu0 0.0
      %602 = vmatprep.subr.mxu0 0.0
      %603 = vmatpush1.msra.mxu0 0.0
      %604 = vmatprep.subr.mxu0 0.0
      %605 = vmatpush1.msra.mxu0 0.0
      %606 = vmatprep.subr.mxu0 0.0
      %607 = vmatpush1.msra.mxu0 0.0
      %608 = vmatprep.subr.mxu0 0.0
      %609 = vmatpush1.msra.mxu0 0.0
      %610 = vmatprep.subr.mxu0 0.0
      %611 = vmatpush1.msra.mxu0 0.0
      %612 = vmatprep.subr.mxu0 0.0
      %613 = vmatpush1.msra.mxu0 0.0
      %614 = vmatprep.subr.mxu0 0.0
      %615 = vmatpush1.msra.mxu0 0.0
      %616 = vmatprep.subr.mxu0 0.0
      %617 = vmatpush1.msra.mxu0 0.0
      %618 = vmatprep.mubr.f32.mxu0 0.0
      %619 = vmatmul.mubr.f32.gmra.mrb[0].mxu0 %v547
      %v620 = vpop.f32.mrb[0].mxu0
      %v621 = vadd.f32 %v552, %v620
      %v622 = vpop.f32.mrb[0].mxu0
      %623 = vdwg.mxu0
      %v625 = vrot.slane %v621, 1
      %v627 = vmax.f32 %v621, %v625
      %v628 = vsub.f32 %v621, %v627
      %v629 = vmul.f32 %v628, 1.442695
      %v630 = vpow.pop %v629
      %v632 = vrot.slane %v627, 7
      %v634 = vsub.f32 %v621, %v632
      %v635 = vmul.f32 %v634, 1.442695
      %v636 = vpow.pop %v635
      %v638 = vrot.slane %v636, 1
      %v640 = vadd.f32 %v630, %v638
      %v641 = vrcp.pop %v640
      %v642 = vmul.f32 %v640, %v641
      %v643 = vsub.f32 2.0, %v642
      %v644 = vmul.f32 %v641, %v643
      %v645 = vmul.f32 %v630, %v644
      %v647 = vrot.slane %v644, 7
      %v649 = vmul.f32 %v636, %v647
      %vm650 = vcmask 1040384
      %v651 = vsel %vm650, %v645, %v649
      %652 = vst [vmem:[%s219] sm:$0x3] %v651
      %p653 = scmp.lt.s32.totalorder %s16, 1
      %s654 = scalar_select %p653, %s16, 1
      %s655 = smul.addr %s654, 2
      %s656 = scalar_lea.vmem %s5, %s655
      // Predicated region
      $region41: #{policy_net_forward.1} parent=39 // pred_check
        %p657 = pneg %p144
      $region42: #{policy_net_forward.1} parent=39 // pred_check_branch
        %659 = sbr.rel (%p657) target = $region44
      $region43: #{policy_net_forward.1} parent=39 // pred_region
        _
      $region44: #{policy_net_forward.1} parent=39 // pred_fallthru
        _
    $region40: #{policy_net_forward.1} parent=5 // pred_fallthru
      _
    %p660 = scmp.le.s32.totalorder 2, %s11
    // Predicated region
    $region45: #{policy_net_forward.1} parent=5 // pred_check
      %p661 = pneg %p660
    $region46: #{policy_net_forward.1} parent=5 // pred_check_branch
      %663 = sbr.rel (%p661) target = $region48
    $region47: #{policy_net_forward.1} parent=5 // pred_region
      %s664 = ssub.s32 %s11, 2
      // Predicated region
      $region49: #{policy_net_forward.1} parent=47 // pred_check
        %p665 = pneg %p150
      $region50: #{policy_net_forward.1} parent=47 // pred_check_branch
        %667 = sbr.rel (%p665) target = $region52
      $region51: #{policy_net_forward.1} parent=47 // pred_region
        %p668 = scmp.lt.s32.totalorder %s17, 1
        %s669 = scalar_select %p668, %s17, 1
        %s670 = smul.addr %s669, 2
        %s671 = scalar_lea.vmem %s5, %s670
      $region52: #{policy_net_forward.1} parent=47 // pred_fallthru
        _
    $region48: #{policy_net_forward.1} parent=5 // pred_fallthru
      _
  $region6: #{policy_net_forward.1} parent=0 // loop_footer
    %s15 = sadd.s32 1, %s11
  $region7: #{policy_net_forward.1} parent=0 // loop_footer_branch
    %10 = sbr.rel target = $region3
  $region8: #{policy_net_forward.1} parent=0 // loop_exit
    _

</llo_original>
